<compile_context>
chip_gen: v7x
topology: tpu7x:2x2x1
jax: 0.10.0
libtpu: 0.0.40
codegen_flags: <defaults>
</compile_context>

<pallas_src>
import functools

import jax
import jax.numpy as jnp
from jax.experimental import pallas as pl
from jax.experimental.pallas import tpu as pltpu


def _normalize_kernel(x_ref, mean_ref, inv_std_ref, o_ref, *, tb):
    # x_ref / o_ref: (TB, LB) tiles of the flattened (R, L) image.
    # mean_ref / inv_std_ref: (Rp, 1) f32 vectors, resident across the grid
    # (constant block index); slice the TB rows belonging to this row block.
    r0 = pl.program_id(0) * tb
    if tb % 8 == 0:
        r0 = pl.multiple_of(r0, 8)
    mean = mean_ref[pl.ds(r0, tb), :]        # (TB, 1) f32
    inv_std = inv_std_ref[pl.ds(r0, tb), :]  # (TB, 1) f32
    x = x_ref[...].astype(jnp.float32)
    o_ref[...] = ((x - mean) * inv_std).astype(o_ref.dtype)


def _vmem_capacity_bytes():
    try:
        return int(pltpu.get_tpu_info().vmem_capacity_bytes)
    except Exception:
        return 64 * 1024 * 1024  # conservative fallback (v7x per-core VMEM)


def _tile_params(R, L, itemsize, budget):
    """Pick (row_block, lane_block, n_row_blocks, n_lane_blocks)."""
    # Sublane pack factor: 8 for f32, 16 for bf16/f16, 32 for int8/fp8.
    pack = max(8, (8 * 4) // max(1, itemsize))

    # Lane (last-dim) block: full row if it fits at minimal row height,
    # otherwise a large multiple of 128 (only the remainder block masks).
    if L * itemsize * pack <= budget:
        lb = L
    else:
        lb = (budget // (pack * itemsize)) // 128 * 128
        lb = int(max(128, min(lb, 8192)))

    # Row (sublane) block: fill the budget, rounded to the pack factor.
    tb = budget // (lb * itemsize)
    tb = int(max(pack, (tb // pack) * pack))
    if tb >= R:
        tb = R  # full-dim block (always legal, even if R % 8 != 0)

    n_row = pl.cdiv(R, tb)
    n_lane = pl.cdiv(L, lb)

    # v7x megacore: guarantee >= 2 grid steps so both TensorCores get work
    # (costs nothing on 1-TC v5e/v6e).
    if n_row * n_lane < 2 and R >= 2 * pack:
        tb = max(pack, ((R // 2) // pack) * pack)
        n_row = pl.cdiv(R, tb)

    return tb, lb, n_row, n_lane


def normalization(img, mean, std):
    """img: (N, C, H, W); mean/std: (C,).  Returns (img - mean) / std."""
    N, C, H, W = img.shape

    # PyTorch Normalize requires a float image; promote integer inputs.
    if not jnp.issubdtype(img.dtype, jnp.floating):
        img = img.astype(jnp.float32)
    dtype = img.dtype
    itemsize = jnp.dtype(dtype).itemsize

    # Per-channel scalars kept in f32 end-to-end; exact reciprocal once.
    mean_c = jnp.asarray(mean, dtype=jnp.float32).reshape(C)
    inv_std_c = 1.0 / jnp.asarray(std, dtype=jnp.float32).reshape(C)

    R = N * C  # one image plane per row of the flattened view
    L = H * W  # lane-dense row length

    x2 = img.reshape(R, L)

    vmem_cap = _vmem_capacity_bytes()
    # Per-tile byte budget; total VMEM ~= 4 * tile (x + out, double-buffered).
    budget = int(max(2 << 20, min(8 << 20, vmem_cap // 24)))

    TB, LB, n_row, n_lane = _tile_params(R, L, itemsize, budget)

    # Row-broadcast f32 vectors (row r = n*C + c -> channel c = r % C),
    # padded to Rp = n_row*TB so the in-kernel dynamic slice of the resident
    # (Rp, 1) block never reads out of bounds.
    Rp = n_row * TB
    mean_rows = jnp.broadcast_to(mean_c, (N, C)).reshape(R)
    inv_std_rows = jnp.broadcast_to(inv_std_c, (N, C)).reshape(R)
    if Rp > R:
        pad = Rp - R
        mean_rows = jnp.pad(mean_rows, (0, pad))
        inv_std_rows = jnp.pad(inv_std_rows, (0, pad), constant_values=1.0)
    mean_rows = mean_rows.reshape(Rp, 1)
    inv_std_rows = inv_std_rows.reshape(Rp, 1)

    # Scoped-VMEM budget: x/out tiles (double-buffered) + resident lane-padded
    # f32 vectors + slack; never below 32 MiB, never above ~3/4 of physical.
    tile_bytes = TB * LB * itemsize
    resident_bytes = 2 * 2 * (-(-Rp // 8) * 8) * 128 * 4
    need = 4 * tile_bytes + resident_bytes + (2 << 20)
    vmem_limit = int(min(max(need, 32 << 20), vmem_cap * 3 // 4))

    out = pl.pallas_call(
        functools.partial(_normalize_kernel, tb=TB),
        out_shape=jax.ShapeDtypeStruct((R, L), dtype),
        grid_spec=pltpu.PrefetchScalarGridSpec(
            num_scalar_prefetch=0,
            grid=(n_row, n_lane),
            in_specs=[
                pl.BlockSpec((TB, LB), lambda i, j: (i, j)),  # x tile
                pl.BlockSpec((Rp, 1), lambda i, j: (0, 0)),   # mean (resident)
                pl.BlockSpec((Rp, 1), lambda i, j: (0, 0)),   # 1/std (resident)
            ],
            out_specs=pl.BlockSpec((TB, LB), lambda i, j: (i, j)),
        ),
        compiler_params=pltpu.CompilerParams(
            dimension_semantics=("parallel", "parallel"),
            vmem_limit_bytes=vmem_limit,
        ),
        cost_estimate=pl.CostEstimate(
            flops=2 * R * L,
            transcendentals=0,
            bytes_accessed=2 * R * L * itemsize,
        ),
    )(x2, mean_rows, inv_std_rows)

    return out.reshape(N, C, H, W)


if __name__ == "__main__":
    key = jax.random.PRNGKey(0)
    N, C, H, W = 2, 4, 16, 16

    img = jax.random.normal(key, (N, C, H, W), dtype=jnp.float32)
    # Deterministic per-channel mean/std (as would be passed to __init__).
    mean = jnp.array([0.485, 0.456, 0.406, 0.5], dtype=jnp.float32)
    std = jnp.array([0.229, 0.224, 0.225, 0.25], dtype=jnp.float32)

    out = normalization(img, mean, std)
    jax.block_until_ready(out)

    # Reference check (plain JAX, mirrors PyTorch broadcasting semantics).
    ref = (img - mean.reshape(-1, 1, 1)) / std.reshape(-1, 1, 1)
    assert out.shape == (N, C, H, W)
    assert out.dtype == img.dtype
    # Reciprocal-multiply differs from true divide by a couple of ULPs.
    assert jnp.allclose(out, ref, atol=1e-6, rtol=1e-5)

    print("KERNEL_OK")
</pallas_src>

<mosaic_0001>
module attributes {stable_mosaic.version = 11 : i64} {
  func.func @_normalize_kernel(%arg0: i32, %arg1: i32, %arg2: memref<8x256xf32, #tpu.memory_space<vmem>>, %arg3: memref<8x1xf32, #tpu.memory_space<vmem>>, %arg4: memref<8x1xf32, #tpu.memory_space<vmem>>, %arg5: memref<8x256xf32, #tpu.memory_space<vmem>>) attributes {dimension_semantics = [#tpu.dimension_semantics<parallel>, #tpu.dimension_semantics<parallel>], iteration_bounds = array<i64: 1, 1>, scalar_prefetch = 0 : i64, scratch_operands = 0 : i64, tpu.core_type = #tpu.core_type<tc>, window_params = [{transform_indices = @transform_0, window_bounds = array<i64: 8, 256>}, {pipeline_mode = #tpu.pipeline_mode<synchronous>, transform_indices = @transform_1, window_bounds = array<i64: 8, 1>}, {pipeline_mode = #tpu.pipeline_mode<synchronous>, transform_indices = @transform_2, window_bounds = array<i64: 8, 1>}, {transform_indices = @transform_3, window_bounds = array<i64: 8, 256>}]} {
    %c8_i32 = arith.constant 8 : i32
    %0 = arith.muli %arg0, %c8_i32 : i32
    %1 = tpu.assume_multiple %0, 8 : i32
    %2 = arith.index_cast %1 : i32 to index
    %c0 = arith.constant 0 : index
    %3 = vector.load %arg3[%2, %c0] : memref<8x1xf32, #tpu.memory_space<vmem>>, vector<8x1xf32>
    %4 = arith.index_cast %1 : i32 to index
    %c0_0 = arith.constant 0 : index
    %5 = vector.load %arg4[%4, %c0_0] : memref<8x1xf32, #tpu.memory_space<vmem>>, vector<8x1xf32>
    %c0_1 = arith.constant 0 : index
    %c0_2 = arith.constant 0 : index
    %6 = vector.load %arg2[%c0_1, %c0_2] : memref<8x256xf32, #tpu.memory_space<vmem>>, vector<8x256xf32>
    %7 = vector.broadcast %3 : vector<8x1xf32> to vector<8x256xf32>
    %8 = arith.subf %6, %7 : vector<8x256xf32>
    %9 = vector.broadcast %5 : vector<8x1xf32> to vector<8x256xf32>
    %10 = arith.mulf %8, %9 : vector<8x256xf32>
    %c0_3 = arith.constant 0 : index
    %c0_4 = arith.constant 0 : index
    %11 = vector.load %arg5[%c0_3, %c0_4] : memref<8x256xf32, #tpu.memory_space<vmem>>, vector<8x256xf32>
    tpu.vector_store %arg5[%c0_3, %c0_4], %10 {strides = array<i32>} : memref<8x256xf32, #tpu.memory_space<vmem>>, vector<8x256xf32>,
    return
  }
  func.func @transform_0(%arg0: i32, %arg1: i32) -> (i32, i32) {
    %c0_i32 = arith.constant 0 : i32
    return %arg0, %arg1 : i32, i32
  }
  func.func @transform_1(%arg0: i32, %arg1: i32) -> (i32, i32) {
    %c0_i32 = arith.constant 0 : i32
    %c0_i32_0 = arith.constant 0 : i32
    %c0_i32_1 = arith.constant 0 : i32
    return %c0_i32, %c0_i32_0 : i32, i32
  }
  func.func @transform_2(%arg0: i32, %arg1: i32) -> (i32, i32) {
    %c0_i32 = arith.constant 0 : i32
    %c0_i32_0 = arith.constant 0 : i32
    %c0_i32_1 = arith.constant 0 : i32
    return %c0_i32, %c0_i32_0 : i32, i32
  }
  func.func @transform_3(%arg0: i32, %arg1: i32) -> (i32, i32) {
    %c0_i32 = arith.constant 0 : i32
    return %arg0, %arg1 : i32, i32
  }
}

</mosaic_0001>

<llo_original>
// kernel: tpu_custom_call.1
$region0: #{tpu_custom_call.1}
  #allocation0 [shape = 'u32[]', space=smem, size = 0x4, offset = 0x4, fixed_abs, tag = 'smem constant byte address 0x4 - core index']
  #allocation1 [shape = 'u32[144,128]{1,0:T(1,128)}', space=vmem, size = 0x12000, scoped, tag = 'internal scratch']
  %s0 = inlined_call_operand.vmem [shape: f32[8,256], index: 0, kind: input, shape index: {}]
  %s1 = inlined_call_operand.vmem [shape: f32[8,1], index: 1, kind: input, shape index: {}]
  %s2 = inlined_call_operand.vmem [shape: f32[8,1], index: 2, kind: input, shape index: {}]
  %s3 = inlined_call_operand.hbm [shape: f32[8,256], index: 3, kind: output, shape index: {}]
  %s4 = sld [smem:[#allocation0]]
  $region22: #{tpu_custom_call.1} parent=0
    _
  %s6 = ssub.s32 1, %s4
  %s7 = scalar_select 0, %s6, %s4
  $region1: #{tpu_custom_call.1} parent=0
    #allocation2 [shape = 'u8[8192]{0}', space=vmem, size = 0x2000, scoped, tag = 'output window, operand 0, single buffered']
    #allocation3 [shape = 's32[1]{0}', space=sflag, size = 0x4, scoped, tag = 'scoped memory for tpu_custom_call.1']
    %8 = vsyncpa [#allocation3], 0
    // Predicated region
    $region2: #{tpu_custom_call.1} parent=1 // pred_check
      _
    $region3: #{tpu_custom_call.1} parent=1 // pred_check_branch
      %10 = sbr.rel (0) target = $region5
    $region4: #{tpu_custom_call.1} parent=1 // pred_region
      _
    $region5: #{tpu_custom_call.1} parent=1 // pred_fallthru
      _
    // Predicated region
    $region6: #{tpu_custom_call.1} parent=1 // pred_check
      _
    $region7: #{tpu_custom_call.1} parent=1 // pred_check_branch
      %12 = sbr.rel (0) target = $region9
    $region8: #{tpu_custom_call.1} parent=1 // pred_region
      _
    $region9: #{tpu_custom_call.1} parent=1 // pred_fallthru
      _
    // Predicated region
    $region10: #{tpu_custom_call.1} parent=1 // pred_check
      _
    $region11: #{tpu_custom_call.1} parent=1 // pred_check_branch
      %14 = sbr.rel (0) target = $region13
    $region12: #{tpu_custom_call.1} parent=1 // pred_region
      _
    $region13: #{tpu_custom_call.1} parent=1 // pred_fallthru
      _
    %s15 = smul.u32 0, 8
    %s16 = scalar_lea.vmem %s1, %s15
    %v17 = vld [vmem:[%s16] sm:$0xff]
    %s18 = scalar_lea.vmem %s2, %s15
    %v19 = vld [vmem:[%s18] sm:$0xff]
    %v20 = vld [vmem:[%s0] sm:$0xff]
    %v21 = vld [vmem:[%s0 + $0x8] sm:$0xff]
    %23 = vset.pattern.permute.xlu0 0
    %24 = vperm.xlu0 %23, %v17
    %v25 = vpop.permute.xlu0 %24
    %v27 = vsub.f32 %v20, %v25
    %v28 = vsub.f32 %v21, %v25
    %30 = vset.pattern.permute.xlu0 0
    %31 = vperm.xlu0 %30, %v19
    %v32 = vpop.permute.xlu0 %31
    %v34 = vmul.f32 %v27, %v32
    %v35 = vmul.f32 %v28, %v32
    %36 = vst [vmem:[#allocation2] sm:$0xff] %v34
    %37 = vst [vmem:[#allocation2 + $0x8] sm:$0xff] %v35
    // Predicated region
    $region14: #{tpu_custom_call.1} parent=1 // pred_check
      _
    $region15: #{tpu_custom_call.1} parent=1 // pred_check_branch
      %39 = sbr.rel (0) target = $region17
    $region16: #{tpu_custom_call.1} parent=1 // pred_region
      %s41 = ssub.s32 256, 256
      %42 = vsyncadd [#allocation3], %s41
      %s44 = sshll.u32 [#allocation2], 4
      %s45 = int_to_ptr.vmem [resolvable:$true] %s44
      %47 = dma.vmem_to_hbm [thread:$0]  %s45, 256, %s3, [#allocation3]
    $region17: #{tpu_custom_call.1} parent=1 // pred_fallthru
      _
    // Predicated region
    $region18: #{tpu_custom_call.1} parent=1 // pred_check
      _
    $region19: #{tpu_custom_call.1} parent=1 // pred_check_branch
      %49 = sbr.rel (0) target = $region21
    $region20: #{tpu_custom_call.1} parent=1 // pred_region
      %50 = dma.done [#allocation3], 256
    $region21: #{tpu_custom_call.1} parent=1 // pred_fallthru
      _
    %51 = vsyncpa [#allocation3], 1

</llo_original>
